<compile_context>
chip_gen: v7x
topology: tpu7x:2x2x1
jax: 0.10.0
libtpu: 0.0.40
codegen_flags: <defaults>
</compile_context>

<pallas_src>
import functools

import jax
import jax.numpy as jnp
from jax.experimental import pallas as pl
from jax.experimental.pallas import tpu as pltpu


def _uncertainty_kernel(x_ref, m_ref, wb_ref, o_ref, *, row_stride):
    """exp(3x3 conv, C->1) on a flattened-spatial batch block.

    x_ref:  (Bt, C, HW)  input block (VMEM), HW = H*W flattened row-major
    m_ref:  (4, HW)      f32 0/1 boundary masks:
                         [dw=-1 valid, dw=+1 valid, dh=-1 valid, dh=+1 valid]
    wb_ref: (C*9 + 1,)   conv weights (index c*9 + kh*3 + kw) then bias (SMEM)
    o_ref:  (Bt, 1, HW)  output block (VMEM)
    """
    bt, ch, hw = x_ref.shape
    w_stride = row_stride
    zero = jnp.float32(0.0)
    half = jnp.float32(0.5)

    # Hoist boundary masks once (JAX does not CSE broadcasts).
    wok_m1 = jnp.broadcast_to(m_ref[0:1, :] > half, (bt, hw))
    wok_p1 = jnp.broadcast_to(m_ref[1:2, :] > half, (bt, hw))
    hok_m1 = jnp.broadcast_to(m_ref[2:3, :] > half, (bt, hw))
    hok_p1 = jnp.broadcast_to(m_ref[3:4, :] > half, (bt, hw))

    # Per-kernel-row (dh = -1, 0, +1) partial sums, accumulated in f32.
    inner = [jnp.zeros((bt, hw), jnp.float32) for _ in range(3)]

    for c in range(ch):
        xc = x_ref[:, c, :].astype(jnp.float32)                         # (Bt, HW)
        # Hoist the two dw = +/-1 lane-shifted taps once per channel
        # (pltpu.roll -> XLU slot) and reuse them across the 3 kernel rows.
        x_m1 = jnp.where(wok_m1, pltpu.roll(xc, 1, axis=1), zero)       # x[p-1]
        x_p1 = jnp.where(wok_p1, pltpu.roll(xc, hw - 1, axis=1), zero)  # x[p+1]
        taps = (x_m1, xc, x_p1)                                         # dw = -1,0,+1
        for kh in range(3):                                             # dh = kh-1
            for kw in range(3):                                         # dw = kw-1
                inner[kh] = inner[kh] + taps[kw] * wb_ref[c * 9 + kh * 3 + kw]

    # Combine the three row offsets: one +/-W lane roll of the already
    # channel-reduced slab per offset, masked at the top/bottom image rows.
    acc = inner[1] + wb_ref[ch * 9]                                     # bias
    acc = acc + jnp.where(hok_m1, pltpu.roll(inner[0], w_stride, axis=1), zero)
    acc = acc + jnp.where(hok_p1, pltpu.roll(inner[2], hw - w_stride, axis=1), zero)

    o_ref[:, 0, :] = jnp.exp(acc).astype(o_ref.dtype)


def uncertainty_module(x_nchw, conv_w, conv_b, *, block_budget_bytes=4 * 1024 * 1024):
    """x_nchw: (B, C, H, W); conv_w: (1, C, 3, 3); conv_b: (1,).

    Returns exp(conv3x3(x) + b), shape (B, 1, H, W), matching
    nn.Conv2d(C, 1, kernel_size=3, padding=1) followed by torch.exp.
    """
    B, C, H, W = x_nchw.shape
    HW = H * W
    dtype = x_nchw.dtype
    itemsize = jnp.dtype(dtype).itemsize

    # Contiguous NCHW reshape (no transpose, no data movement): spatial -> lanes.
    x_flat = x_nchw.reshape(B, C, HW)

    # 0/1 boundary-validity masks for the shifted taps (replaces jnp.pad; the
    # halo is handled in-kernel so x is read from HBM exactly once). These are
    # input-independent, so jit constant-folds them in a full-model context.
    flat = jnp.arange(HW, dtype=jnp.int32)
    w_idx = flat % W
    masks = jnp.stack([
        w_idx >= 1,            # dw = -1 valid
        w_idx <= W - 2,        # dw = +1 valid
        flat >= W,             # dh = -1 valid
        flat < (H - 1) * W,    # dh = +1 valid
    ]).astype(jnp.float32)     # (4, HW)

    # Conv weights + bias as one flat 1-D f32 SMEM array (avoids 2-D SMEM padding).
    wb = jnp.concatenate([conv_w.reshape(C * 9).astype(jnp.float32),
                          conv_b.reshape(1).astype(jnp.float32)])

    # Batch-block size: as many images per grid step as fit the per-buffer VMEM
    # budget (kept small enough for v5e's 16 MiB default scoped VMEM with
    # double buffering). For the tiny test this gives Bt = B, grid = (1,).
    bt = 1
    for cand in range(1, B + 1):
        if B % cand == 0 and cand * C * HW * itemsize <= block_budget_bytes:
            bt = cand
    grid = (B // bt,)
    # TODO(synk): for large H*W, add an H-strip grid axis (2-row halo per strip)
    # marked "parallel" so both v7x TensorCores stay busy and blocks fit v7x's
    # 64 MiB VMEM; on v6e a raised vmem_limit_bytes can keep the single big
    # per-image block instead (gate per chip via pltpu.get_tpu_info()).

    kernel = functools.partial(_uncertainty_kernel, row_stride=W)

    cost = pl.CostEstimate(
        flops=2 * B * HW * C * 9,
        transcendentals=B * HW,
        bytes_accessed=(B * C * HW + B * HW) * itemsize + (4 * HW + C * 9 + 1) * 4,
    )

    out_flat = pl.pallas_call(
        kernel,
        out_shape=jax.ShapeDtypeStruct((B, 1, HW), dtype),
        grid_spec=pltpu.PrefetchScalarGridSpec(
            num_scalar_prefetch=0,
            grid=grid,
            in_specs=[
                # One batch block per grid step; last two dims equal the full
                # array dims, HW (a multiple of 128 here) is the lane axis.
                pl.BlockSpec((bt, C, HW), lambda i: (i, 0, 0)),
                # Boundary masks: constant block, re-used every step.
                pl.BlockSpec((4, HW), lambda i: (0, 0)),
                # Flat weights + bias as SMEM scalars.
                pl.BlockSpec((C * 9 + 1,), lambda i: (0,),
                             memory_space=pltpu.SMEM),
            ],
            out_specs=pl.BlockSpec((bt, 1, HW), lambda i: (i, 0, 0)),
        ),
        compiler_params=pltpu.CompilerParams(
            dimension_semantics=("parallel",)),   # megacore over batch blocks
        cost_estimate=cost,
    )(x_flat, masks, wb)

    return out_flat.reshape(B, 1, H, W)


if __name__ == "__main__":
    key = jax.random.PRNGKey(0)
    kx, kw_, kb = jax.random.split(key, 3)

    B, C, H, W = 2, 4, 16, 16
    x = jax.random.normal(kx, (B, C, H, W), dtype=jnp.float32)
    # nn.Conv2d(in_channels=C, out_channels=1, kernel_size=3, padding=1) params
    conv_w = jax.random.normal(kw_, (1, C, 3, 3), dtype=jnp.float32) * 0.1
    conv_b = jax.random.normal(kb, (1,), dtype=jnp.float32) * 0.1

    out = jax.block_until_ready(uncertainty_module(x, conv_w, conv_b))

    # plain-JAX reference: explicit shift-and-add 3x3 conv in exact f32 math.
    xp = jnp.pad(x, ((0, 0), (0, 0), (1, 1), (1, 1)))
    wr = conv_w.reshape(C, 3, 3)
    logits = jnp.zeros((B, H, W), jnp.float32) + conv_b[0]
    for c in range(C):
        for kh in range(3):
            for kw in range(3):
                logits = logits + xp[:, c, kh:kh + H, kw:kw + W] * wr[c, kh, kw]
    ref = jnp.exp(logits)[:, None, :, :]

    assert out.shape == (B, 1, H, W)
    err = float(jnp.max(jnp.abs(out - ref)))
    assert jnp.allclose(out, ref, atol=1e-5, rtol=1e-5), err

    print("KERNEL_OK")
</pallas_src>

<mosaic_0001>
module attributes {stable_mosaic.version = 11 : i64} {
  func.func @_uncertainty_kernel(%arg0: i32, %arg1: memref<2x4x256xf32, #tpu.memory_space<vmem>>, %arg2: memref<4x256xf32, #tpu.memory_space<vmem>>, %arg3: memref<37xf32, #tpu.memory_space<smem>>, %arg4: memref<2x1x256xf32, #tpu.memory_space<vmem>>) attributes {dimension_semantics = [#tpu.dimension_semantics<parallel>], iteration_bounds = array<i64: 1>, scalar_prefetch = 0 : i64, scratch_operands = 0 : i64, tpu.core_type = #tpu.core_type<tc>, window_params = [{transform_indices = @transform_0, window_bounds = array<i64: 2, 4, 256>}, {pipeline_mode = #tpu.pipeline_mode<synchronous>, transform_indices = @transform_1, window_bounds = array<i64: 4, 256>}, {transform_indices = @transform_2, window_bounds = array<i64: 37>}, {transform_indices = @transform_3, window_bounds = array<i64: 2, 1, 256>}]} {
    %c0 = arith.constant 0 : index
    %c0_0 = arith.constant 0 : index
    %0 = vector.load %arg2[%c0, %c0_0] : memref<4x256xf32, #tpu.memory_space<vmem>>, vector<1x256xf32>
    %cst = arith.constant 5.000000e-01 : f32
    %1 = vector.broadcast %cst : f32 to vector<1x256xf32>
    %2 = arith.cmpf ogt, %0, %1 : vector<1x256xf32>
    %3 = vector.shape_cast %2 : vector<1x256xi1> to vector<1x256xi1>
    %4 = vector.broadcast %3 : vector<1x256xi1> to vector<2x256xi1>
    %c1 = arith.constant 1 : index
    %c0_1 = arith.constant 0 : index
    %5 = vector.load %arg2[%c1, %c0_1] : memref<4x256xf32, #tpu.memory_space<vmem>>, vector<1x256xf32>
    %cst_2 = arith.constant 5.000000e-01 : f32
    %6 = vector.broadcast %cst_2 : f32 to vector<1x256xf32>
    %7 = arith.cmpf ogt, %5, %6 : vector<1x256xf32>
    %8 = vector.shape_cast %7 : vector<1x256xi1> to vector<1x256xi1>
    %9 = vector.broadcast %8 : vector<1x256xi1> to vector<2x256xi1>
    %c2 = arith.constant 2 : index
    %c0_3 = arith.constant 0 : index
    %10 = vector.load %arg2[%c2, %c0_3] : memref<4x256xf32, #tpu.memory_space<vmem>>, vector<1x256xf32>
    %cst_4 = arith.constant 5.000000e-01 : f32
    %11 = vector.broadcast %cst_4 : f32 to vector<1x256xf32>
    %12 = arith.cmpf ogt, %10, %11 : vector<1x256xf32>
    %13 = vector.shape_cast %12 : vector<1x256xi1> to vector<1x256xi1>
    %14 = vector.broadcast %13 : vector<1x256xi1> to vector<2x256xi1>
    %c3 = arith.constant 3 : index
    %c0_5 = arith.constant 0 : index
    %15 = vector.load %arg2[%c3, %c0_5] : memref<4x256xf32, #tpu.memory_space<vmem>>, vector<1x256xf32>
    %cst_6 = arith.constant 5.000000e-01 : f32
    %16 = vector.broadcast %cst_6 : f32 to vector<1x256xf32>
    %17 = arith.cmpf ogt, %15, %16 : vector<1x256xf32>
    %18 = vector.shape_cast %17 : vector<1x256xi1> to vector<1x256xi1>
    %19 = vector.broadcast %18 : vector<1x256xi1> to vector<2x256xi1>
    %cst_7 = arith.constant 0.000000e+00 : f32
    %20 = vector.broadcast %cst_7 : f32 to vector<2x256xf32>
    %cst_8 = arith.constant 0.000000e+00 : f32
    %21 = vector.broadcast %cst_8 : f32 to vector<2x256xf32>
    %cst_9 = arith.constant 0.000000e+00 : f32
    %22 = vector.broadcast %cst_9 : f32 to vector<2x256xf32>
    %c0_10 = arith.constant 0 : index
    %c0_11 = arith.constant 0 : index
    %c0_12 = arith.constant 0 : index
    %23 = vector.load %arg1[%c0_10, %c0_11, %c0_12] : memref<2x4x256xf32, #tpu.memory_space<vmem>>, vector<2x1x256xf32>
    %24 = vector.shape_cast %23 : vector<2x1x256xf32> to vector<2x256xf32>
    %c1_i32 = arith.constant 1 : i32
    %25 = tpu.dynamic_rotate %24 by %c1_i32 dim 1 : vector<2x256xf32>, i32 -> vector<2x256xf32>
    %cst_13 = arith.constant 0.000000e+00 : f32
    %26 = vector.broadcast %cst_13 : f32 to vector<2x256xf32>
    %27 = arith.select %4, %25, %26 : vector<2x256xi1>, vector<2x256xf32>
    %c255_i32 = arith.constant 255 : i32
    %28 = tpu.dynamic_rotate %24 by %c255_i32 dim 1 : vector<2x256xf32>, i32 -> vector<2x256xf32>
    %cst_14 = arith.constant 0.000000e+00 : f32
    %29 = vector.broadcast %cst_14 : f32 to vector<2x256xf32>
    %30 = arith.select %9, %28, %29 : vector<2x256xi1>, vector<2x256xf32>
    %c0_15 = arith.constant 0 : index
    %31 = memref.load %arg3[%c0_15] : memref<37xf32, #tpu.memory_space<smem>>
    %32 = vector.broadcast %31 : f32 to vector<2x256xf32>
    %33 = arith.mulf %27, %32 : vector<2x256xf32>
    %34 = arith.addf %20, %33 : vector<2x256xf32>
    %c1_16 = arith.constant 1 : index
    %35 = memref.load %arg3[%c1_16] : memref<37xf32, #tpu.memory_space<smem>>
    %36 = vector.broadcast %35 : f32 to vector<2x256xf32>
    %37 = arith.mulf %24, %36 : vector<2x256xf32>
    %38 = arith.addf %34, %37 : vector<2x256xf32>
    %c2_17 = arith.constant 2 : index
    %39 = memref.load %arg3[%c2_17] : memref<37xf32, #tpu.memory_space<smem>>
    %40 = vector.broadcast %39 : f32 to vector<2x256xf32>
    %41 = arith.mulf %30, %40 : vector<2x256xf32>
    %42 = arith.addf %38, %41 : vector<2x256xf32>
    %c3_18 = arith.constant 3 : index
    %43 = memref.load %arg3[%c3_18] : memref<37xf32, #tpu.memory_space<smem>>
    %44 = vector.broadcast %43 : f32 to vector<2x256xf32>
    %45 = arith.mulf %27, %44 : vector<2x256xf32>
    %46 = arith.addf %21, %45 : vector<2x256xf32>
    %c4 = arith.constant 4 : index
    %47 = memref.load %arg3[%c4] : memref<37xf32, #tpu.memory_space<smem>>
    %48 = vector.broadcast %47 : f32 to vector<2x256xf32>
    %49 = arith.mulf %24, %48 : vector<2x256xf32>
    %50 = arith.addf %46, %49 : vector<2x256xf32>
    %c5 = arith.constant 5 : index
    %51 = memref.load %arg3[%c5] : memref<37xf32, #tpu.memory_space<smem>>
    %52 = vector.broadcast %51 : f32 to vector<2x256xf32>
    %53 = arith.mulf %30, %52 : vector<2x256xf32>
    %54 = arith.addf %50, %53 : vector<2x256xf32>
    %c6 = arith.constant 6 : index
    %55 = memref.load %arg3[%c6] : memref<37xf32, #tpu.memory_space<smem>>
    %56 = vector.broadcast %55 : f32 to vector<2x256xf32>
    %57 = arith.mulf %27, %56 : vector<2x256xf32>
    %58 = arith.addf %22, %57 : vector<2x256xf32>
    %c7 = arith.constant 7 : index
    %59 = memref.load %arg3[%c7] : memref<37xf32, #tpu.memory_space<smem>>
    %60 = vector.broadcast %59 : f32 to vector<2x256xf32>
    %61 = arith.mulf %24, %60 : vector<2x256xf32>
    %62 = arith.addf %58, %61 : vector<2x256xf32>
    %c8 = arith.constant 8 : index
    %63 = memref.load %arg3[%c8] : memref<37xf32, #tpu.memory_space<smem>>
    %64 = vector.broadcast %63 : f32 to vector<2x256xf32>
    %65 = arith.mulf %30, %64 : vector<2x256xf32>
    %66 = arith.addf %62, %65 : vector<2x256xf32>
    %c0_19 = arith.constant 0 : index
    %c1_20 = arith.constant 1 : index
    %c0_21 = arith.constant 0 : index
    %67 = vector.load %arg1[%c0_19, %c1_20, %c0_21] : memref<2x4x256xf32, #tpu.memory_space<vmem>>, vector<2x1x256xf32>
    %68 = vector.shape_cast %67 : vector<2x1x256xf32> to vector<2x256xf32>
    %c1_i32_22 = arith.constant 1 : i32
    %69 = tpu.dynamic_rotate %68 by %c1_i32_22 dim 1 : vector<2x256xf32>, i32 -> vector<2x256xf32>
    %cst_23 = arith.constant 0.000000e+00 : f32
    %70 = vector.broadcast %cst_23 : f32 to vector<2x256xf32>
    %71 = arith.select %4, %69, %70 : vector<2x256xi1>, vector<2x256xf32>
    %c255_i32_24 = arith.constant 255 : i32
    %72 = tpu.dynamic_rotate %68 by %c255_i32_24 dim 1 : vector<2x256xf32>, i32 -> vector<2x256xf32>
    %cst_25 = arith.constant 0.000000e+00 : f32
    %73 = vector.broadcast %cst_25 : f32 to vector<2x256xf32>
    %74 = arith.select %9, %72, %73 : vector<2x256xi1>, vector<2x256xf32>
    %c9 = arith.constant 9 : index
    %75 = memref.load %arg3[%c9] : memref<37xf32, #tpu.memory_space<smem>>
    %76 = vector.broadcast %75 : f32 to vector<2x256xf32>
    %77 = arith.mulf %71, %76 : vector<2x256xf32>
    %78 = arith.addf %42, %77 : vector<2x256xf32>
    %c10 = arith.constant 10 : index
    %79 = memref.load %arg3[%c10] : memref<37xf32, #tpu.memory_space<smem>>
    %80 = vector.broadcast %79 : f32 to vector<2x256xf32>
    %81 = arith.mulf %68, %80 : vector<2x256xf32>
    %82 = arith.addf %78, %81 : vector<2x256xf32>
    %c11 = arith.constant 11 : index
    %83 = memref.load %arg3[%c11] : memref<37xf32, #tpu.memory_space<smem>>
    %84 = vector.broadcast %83 : f32 to vector<2x256xf32>
    %85 = arith.mulf %74, %84 : vector<2x256xf32>
    %86 = arith.addf %82, %85 : vector<2x256xf32>
    %c12 = arith.constant 12 : index
    %87 = memref.load %arg3[%c12] : memref<37xf32, #tpu.memory_space<smem>>
    %88 = vector.broadcast %87 : f32 to vector<2x256xf32>
    %89 = arith.mulf %71, %88 : vector<2x256xf32>
    %90 = arith.addf %54, %89 : vector<2x256xf32>
    %c13 = arith.constant 13 : index
    %91 = memref.load %arg3[%c13] : memref<37xf32, #tpu.memory_space<smem>>
    %92 = vector.broadcast %91 : f32 to vector<2x256xf32>
    %93 = arith.mulf %68, %92 : vector<2x256xf32>
    %94 = arith.addf %90, %93 : vector<2x256xf32>
    %c14 = arith.constant 14 : index
    %95 = memref.load %arg3[%c14] : memref<37xf32, #tpu.memory_space<smem>>
    %96 = vector.broadcast %95 : f32 to vector<2x256xf32>
    %97 = arith.mulf %74, %96 : vector<2x256xf32>
    %98 = arith.addf %94, %97 : vector<2x256xf32>
    %c15 = arith.constant 15 : index
    %99 = memref.load %arg3[%c15] : memref<37xf32, #tpu.memory_space<smem>>
    %100 = vector.broadcast %99 : f32 to vector<2x256xf32>
    %101 = arith.mulf %71, %100 : vector<2x256xf32>
    %102 = arith.addf %66, %101 : vector<2x256xf32>
    %c16 = arith.constant 16 : index
    %103 = memref.load %arg3[%c16] : memref<37xf32, #tpu.memory_space<smem>>
    %104 = vector.broadcast %103 : f32 to vector<2x256xf32>
    %105 = arith.mulf %68, %104 : vector<2x256xf32>
    %106 = arith.addf %102, %105 : vector<2x256xf32>
    %c17 = arith.constant 17 : index
    %107 = memref.load %arg3[%c17] : memref<37xf32, #tpu.memory_space<smem>>
    %108 = vector.broadcast %107 : f32 to vector<2x256xf32>
    %109 = arith.mulf %74, %108 : vector<2x256xf32>
    %110 = arith.addf %106, %109 : vector<2x256xf32>
    %c0_26 = arith.constant 0 : index
    %c2_27 = arith.constant 2 : index
    %c0_28 = arith.constant 0 : index
    %111 = vector.load %arg1[%c0_26, %c2_27, %c0_28] : memref<2x4x256xf32, #tpu.memory_space<vmem>>, vector<2x1x256xf32>
    %112 = vector.shape_cast %111 : vector<2x1x256xf32> to vector<2x256xf32>
    %c1_i32_29 = arith.constant 1 : i32
    %113 = tpu.dynamic_rotate %112 by %c1_i32_29 dim 1 : vector<2x256xf32>, i32 -> vector<2x256xf32>
    %cst_30 = arith.constant 0.000000e+00 : f32
    %114 = vector.broadcast %cst_30 : f32 to vector<2x256xf32>
    %115 = arith.select %4, %113, %114 : vector<2x256xi1>, vector<2x256xf32>
    %c255_i32_31 = arith.constant 255 : i32
    %116 = tpu.dynamic_rotate %112 by %c255_i32_31 dim 1 : vector<2x256xf32>, i32 -> vector<2x256xf32>
    %cst_32 = arith.constant 0.000000e+00 : f32
    %117 = vector.broadcast %cst_32 : f32 to vector<2x256xf32>
    %118 = arith.select %9, %116, %117 : vector<2x256xi1>, vector<2x256xf32>
    %c18 = arith.constant 18 : index
    %119 = memref.load %arg3[%c18] : memref<37xf32, #tpu.memory_space<smem>>
    %120 = vector.broadcast %119 : f32 to vector<2x256xf32>
    %121 = arith.mulf %115, %120 : vector<2x256xf32>
    %122 = arith.addf %86, %121 : vector<2x256xf32>
    %c19 = arith.constant 19 : index
    %123 = memref.load %arg3[%c19] : memref<37xf32, #tpu.memory_space<smem>>
    %124 = vector.broadcast %123 : f32 to vector<2x256xf32>
    %125 = arith.mulf %112, %124 : vector<2x256xf32>
    %126 = arith.addf %122, %125 : vector<2x256xf32>
    %c20 = arith.constant 20 : index
    %127 = memref.load %arg3[%c20] : memref<37xf32, #tpu.memory_space<smem>>
    %128 = vector.broadcast %127 : f32 to vector<2x256xf32>
    %129 = arith.mulf %118, %128 : vector<2x256xf32>
    %130 = arith.addf %126, %129 : vector<2x256xf32>
    %c21 = arith.constant 21 : index
    %131 = memref.load %arg3[%c21] : memref<37xf32, #tpu.memory_space<smem>>
    %132 = vector.broadcast %131 : f32 to vector<2x256xf32>
    %133 = arith.mulf %115, %132 : vector<2x256xf32>
    %134 = arith.addf %98, %133 : vector<2x256xf32>
    %c22 = arith.constant 22 : index
    %135 = memref.load %arg3[%c22] : memref<37xf32, #tpu.memory_space<smem>>
    %136 = vector.broadcast %135 : f32 to vector<2x256xf32>
    %137 = arith.mulf %112, %136 : vector<2x256xf32>
    %138 = arith.addf %134, %137 : vector<2x256xf32>
    %c23 = arith.constant 23 : index
    %139 = memref.load %arg3[%c23] : memref<37xf32, #tpu.memory_space<smem>>
    %140 = vector.broadcast %139 : f32 to vector<2x256xf32>
    %141 = arith.mulf %118, %140 : vector<2x256xf32>
    %142 = arith.addf %138, %141 : vector<2x256xf32>
    %c24 = arith.constant 24 : index
    %143 = memref.load %arg3[%c24] : memref<37xf32, #tpu.memory_space<smem>>
    %144 = vector.broadcast %143 : f32 to vector<2x256xf32>
    %145 = arith.mulf %115, %144 : vector<2x256xf32>
    %146 = arith.addf %110, %145 : vector<2x256xf32>
    %c25 = arith.constant 25 : index
    %147 = memref.load %arg3[%c25] : memref<37xf32, #tpu.memory_space<smem>>
    %148 = vector.broadcast %147 : f32 to vector<2x256xf32>
    %149 = arith.mulf %112, %148 : vector<2x256xf32>
    %150 = arith.addf %146, %149 : vector<2x256xf32>
    %c26 = arith.constant 26 : index
    %151 = memref.load %arg3[%c26] : memref<37xf32, #tpu.memory_space<smem>>
    %152 = vector.broadcast %151 : f32 to vector<2x256xf32>
    %153 = arith.mulf %118, %152 : vector<2x256xf32>
    %154 = arith.addf %150, %153 : vector<2x256xf32>
    %c0_33 = arith.constant 0 : index
    %c3_34 = arith.constant 3 : index
    %c0_35 = arith.constant 0 : index
    %155 = vector.load %arg1[%c0_33, %c3_34, %c0_35] : memref<2x4x256xf32, #tpu.memory_space<vmem>>, vector<2x1x256xf32>
    %156 = vector.shape_cast %155 : vector<2x1x256xf32> to vector<2x256xf32>
    %c1_i32_36 = arith.constant 1 : i32
    %157 = tpu.dynamic_rotate %156 by %c1_i32_36 dim 1 : vector<2x256xf32>, i32 -> vector<2x256xf32>
    %cst_37 = arith.constant 0.000000e+00 : f32
    %158 = vector.broadcast %cst_37 : f32 to vector<2x256xf32>
    %159 = arith.select %4, %157, %158 : vector<2x256xi1>, vector<2x256xf32>
    %c255_i32_38 = arith.constant 255 : i32
    %160 = tpu.dynamic_rotate %156 by %c255_i32_38 dim 1 : vector<2x256xf32>, i32 -> vector<2x256xf32>
    %cst_39 = arith.constant 0.000000e+00 : f32
    %161 = vector.broadcast %cst_39 : f32 to vector<2x256xf32>
    %162 = arith.select %9, %160, %161 : vector<2x256xi1>, vector<2x256xf32>
    %c27 = arith.constant 27 : index
    %163 = memref.load %arg3[%c27] : memref<37xf32, #tpu.memory_space<smem>>
    %164 = vector.broadcast %163 : f32 to vector<2x256xf32>
    %165 = arith.mulf %159, %164 : vector<2x256xf32>
    %166 = arith.addf %130, %165 : vector<2x256xf32>
    %c28 = arith.constant 28 : index
    %167 = memref.load %arg3[%c28] : memref<37xf32, #tpu.memory_space<smem>>
    %168 = vector.broadcast %167 : f32 to vector<2x256xf32>
    %169 = arith.mulf %156, %168 : vector<2x256xf32>
    %170 = arith.addf %166, %169 : vector<2x256xf32>
    %c29 = arith.constant 29 : index
    %171 = memref.load %arg3[%c29] : memref<37xf32, #tpu.memory_space<smem>>
    %172 = vector.broadcast %171 : f32 to vector<2x256xf32>
    %173 = arith.mulf %162, %172 : vector<2x256xf32>
    %174 = arith.addf %170, %173 : vector<2x256xf32>
    %c30 = arith.constant 30 : index
    %175 = memref.load %arg3[%c30] : memref<37xf32, #tpu.memory_space<smem>>
    %176 = vector.broadcast %175 : f32 to vector<2x256xf32>
    %177 = arith.mulf %159, %176 : vector<2x256xf32>
    %178 = arith.addf %142, %177 : vector<2x256xf32>
    %c31 = arith.constant 31 : index
    %179 = memref.load %arg3[%c31] : memref<37xf32, #tpu.memory_space<smem>>
    %180 = vector.broadcast %179 : f32 to vector<2x256xf32>
    %181 = arith.mulf %156, %180 : vector<2x256xf32>
    %182 = arith.addf %178, %181 : vector<2x256xf32>
    %c32 = arith.constant 32 : index
    %183 = memref.load %arg3[%c32] : memref<37xf32, #tpu.memory_space<smem>>
    %184 = vector.broadcast %183 : f32 to vector<2x256xf32>
    %185 = arith.mulf %162, %184 : vector<2x256xf32>
    %186 = arith.addf %182, %185 : vector<2x256xf32>
    %c33 = arith.constant 33 : index
    %187 = memref.load %arg3[%c33] : memref<37xf32, #tpu.memory_space<smem>>
    %188 = vector.broadcast %187 : f32 to vector<2x256xf32>
    %189 = arith.mulf %159, %188 : vector<2x256xf32>
    %190 = arith.addf %154, %189 : vector<2x256xf32>
    %c34 = arith.constant 34 : index
    %191 = memref.load %arg3[%c34] : memref<37xf32, #tpu.memory_space<smem>>
    %192 = vector.broadcast %191 : f32 to vector<2x256xf32>
    %193 = arith.mulf %156, %192 : vector<2x256xf32>
    %194 = arith.addf %190, %193 : vector<2x256xf32>
    %c35 = arith.constant 35 : index
    %195 = memref.load %arg3[%c35] : memref<37xf32, #tpu.memory_space<smem>>
    %196 = vector.broadcast %195 : f32 to vector<2x256xf32>
    %197 = arith.mulf %162, %196 : vector<2x256xf32>
    %198 = arith.addf %194, %197 : vector<2x256xf32>
    %c36 = arith.constant 36 : index
    %199 = memref.load %arg3[%c36] : memref<37xf32, #tpu.memory_space<smem>>
    %200 = vector.broadcast %199 : f32 to vector<2x256xf32>
    %201 = arith.addf %186, %200 : vector<2x256xf32>
    %c16_i32 = arith.constant 16 : i32
    %202 = tpu.dynamic_rotate %174 by %c16_i32 dim 1 : vector<2x256xf32>, i32 -> vector<2x256xf32>
    %cst_40 = arith.constant 0.000000e+00 : f32
    %203 = vector.broadcast %cst_40 : f32 to vector<2x256xf32>
    %204 = arith.select %14, %202, %203 : vector<2x256xi1>, vector<2x256xf32>
    %205 = arith.addf %201, %204 : vector<2x256xf32>
    %c240_i32 = arith.constant 240 : i32
    %206 = tpu.dynamic_rotate %198 by %c240_i32 dim 1 : vector<2x256xf32>, i32 -> vector<2x256xf32>
    %cst_41 = arith.constant 0.000000e+00 : f32
    %207 = vector.broadcast %cst_41 : f32 to vector<2x256xf32>
    %208 = arith.select %19, %206, %207 : vector<2x256xi1>, vector<2x256xf32>
    %209 = arith.addf %205, %208 : vector<2x256xf32>
    %210 = math.exp %209 : vector<2x256xf32>
    %c0_42 = arith.constant 0 : index
    %c0_43 = arith.constant 0 : index
    %c0_44 = arith.constant 0 : index
    %211 = vector.load %arg4[%c0_42, %c0_43, %c0_44] : memref<2x1x256xf32, #tpu.memory_space<vmem>>, vector<2x1x256xf32>
    %212 = vector.shape_cast %211 : vector<2x1x256xf32> to vector<2x256xf32>
    %213 = vector.shape_cast %210 : vector<2x256xf32> to vector<2x1x256xf32>
    tpu.vector_store %arg4[%c0_42, %c0_43, %c0_44], %213 {strides = array<i32>} : memref<2x1x256xf32, #tpu.memory_space<vmem>>, vector<2x1x256xf32>,
    return
  }
  func.func @transform_0(%arg0: i32) -> (i32, i32, i32) {
    %c0_i32 = arith.constant 0 : i32
    %c0_i32_0 = arith.constant 0 : i32
    %c0_i32_1 = arith.constant 0 : i32
    return %arg0, %c0_i32, %c0_i32_0 : i32, i32, i32
  }
  func.func @transform_1(%arg0: i32) -> (i32, i32) {
    %c0_i32 = arith.constant 0 : i32
    %c0_i32_0 = arith.constant 0 : i32
    %c0_i32_1 = arith.constant 0 : i32
    return %c0_i32, %c0_i32_0 : i32, i32
  }
  func.func @transform_2(%arg0: i32) -> i32 {
    %c0_i32 = arith.constant 0 : i32
    %c0_i32_0 = arith.constant 0 : i32
    return %c0_i32 : i32
  }
  func.func @transform_3(%arg0: i32) -> (i32, i32, i32) {
    %c0_i32 = arith.constant 0 : i32
    %c0_i32_0 = arith.constant 0 : i32
    %c0_i32_1 = arith.constant 0 : i32
    return %arg0, %c0_i32, %c0_i32_0 : i32, i32, i32
  }
}

</mosaic_0001>

<llo_original>
// kernel: tpu_custom_call.1
$region0: #{tpu_custom_call.1}
  #allocation0 [shape = 'u32[]', space=smem, size = 0x4, offset = 0x4, fixed_abs, tag = 'smem constant byte address 0x4 - core index']
  #allocation1 [shape = 'u32[144,128]{1,0:T(1,128)}', space=vmem, size = 0x12000, scoped, tag = 'internal scratch']
  %s0 = inlined_call_operand.hbm [shape: f32[2,4,256], index: 0, kind: input, shape index: {}]
  %s1 = inlined_call_operand.hbm [shape: f32[4,256], index: 1, kind: input, shape index: {}]
  %s2 = inlined_call_operand.vmem [shape: f32[37], index: 2, kind: input, shape index: {}]
  %s3 = inlined_call_operand.hbm [shape: f32[2,1,256], index: 3, kind: output, shape index: {}]
  %s4 = sld [smem:[#allocation0]]
  $region34: #{tpu_custom_call.1} parent=0
    _
  %s6 = ssub.s32 1, %s4
  %s7 = scalar_select 0, %s6, %s4
  $region1: #{tpu_custom_call.1} parent=0
    #allocation2 [shape = 'u8[8192]{0}', space=vmem, size = 0x2000, scoped, tag = 'input window, operand 0, single buffered']
    #allocation3 [shape = 's32[1]{0}', space=sflag, size = 0x4, scoped, tag = 'scoped memory for tpu_custom_call.1']
    #allocation4 [shape = 's32[1]{0}', space=sflag, size = 0x4, scoped, tag = 'scoped memory for tpu_custom_call.1']
    #allocation5 [shape = 's32[1]{0}', space=sflag, size = 0x4, scoped, tag = 'scoped memory for tpu_custom_call.1']
    #allocation6 [shape = 'u8[4096]{0}', space=vmem, size = 0x1000, scoped, tag = 'input window, operand 1, single buffered']
    #allocation7 [shape = 's32[1]{0}', space=sflag, size = 0x4, scoped, tag = 'scoped memory for tpu_custom_call.1']
    #allocation8 [shape = 'u8[512]{0}', space=smem, size = 0x200, scoped, tag = 'input window, operand 2, single buffered']
    #allocation9 [shape = 'u8[2048]{0}', space=vmem, size = 0x800, scoped, tag = 'output window, operand 0, single buffered']
    %8 = vsyncpa [#allocation3], 0
    %9 = vsyncpa [#allocation7], 0
    %10 = vsyncpa [#allocation5], 0
    %11 = vsyncpa [#allocation4], 0
    // Predicated region
    $region2: #{tpu_custom_call.1} parent=1 // pred_check
      _
    $region3: #{tpu_custom_call.1} parent=1 // pred_check_branch
      %13 = sbr.rel (0) target = $region5
    $region4: #{tpu_custom_call.1} parent=1 // pred_region
      %s15 = ssub.s32 256, 256
      %16 = vsyncadd [#allocation3], %s15
      %s17 = sshll.u32 [#allocation2], 4
      %s18 = int_to_ptr.vmem [resolvable:$true] %s17
      %23 = dma.hbm_to_vmem [thread:$0]  %s0, 256, %s18, [#allocation3], 128, 128, 8
    $region5: #{tpu_custom_call.1} parent=1 // pred_fallthru
      _
    // Predicated region
    $region6: #{tpu_custom_call.1} parent=1 // pred_check
      _
    $region7: #{tpu_custom_call.1} parent=1 // pred_check_branch
      %25 = sbr.rel (0) target = $region9
    $region8: #{tpu_custom_call.1} parent=1 // pred_region
      %s27 = ssub.s32 128, 128
      %28 = vsyncadd [#allocation7], %s27
      %s30 = sshll.u32 [#allocation6], 4
      %s31 = int_to_ptr.vmem [resolvable:$true] %s30
      %33 = dma.hbm_to_vmem [thread:$0]  %s1, 128, %s31, [#allocation7]
    $region9: #{tpu_custom_call.1} parent=1 // pred_fallthru
      _
    // Predicated region
    $region10: #{tpu_custom_call.1} parent=1 // pred_check
      _
    $region11: #{tpu_custom_call.1} parent=1 // pred_check_branch
      %35 = sbr.rel (0) target = $region13
    $region12: #{tpu_custom_call.1} parent=1 // pred_region
      %s37 = ssub.s32 16, 16
      %38 = vsyncadd [#allocation5], %s37
      %s40 = sshll.u32 %s2, 4
      %s41 = int_to_ptr.vmem [resolvable:$true] %s40
      %43 = dma.vmem_to_smem %s41, 16, [#allocation8], [#allocation5]
    $region13: #{tpu_custom_call.1} parent=1 // pred_fallthru
      _
    // Predicated region
    $region14: #{tpu_custom_call.1} parent=1 // pred_check
      _
    $region15: #{tpu_custom_call.1} parent=1 // pred_check_branch
      %45 = sbr.rel (0) target = $region17
    $region16: #{tpu_custom_call.1} parent=1 // pred_region
      %46 = dma.done [#allocation3], 256
    $region17: #{tpu_custom_call.1} parent=1 // pred_fallthru
      _
    // Predicated region
    $region18: #{tpu_custom_call.1} parent=1 // pred_check
      _
    $region19: #{tpu_custom_call.1} parent=1 // pred_check_branch
      %48 = sbr.rel (0) target = $region21
    $region20: #{tpu_custom_call.1} parent=1 // pred_region
      %49 = dma.done [#allocation7], 128
    $region21: #{tpu_custom_call.1} parent=1 // pred_fallthru
      _
    // Predicated region
    $region22: #{tpu_custom_call.1} parent=1 // pred_check
      _
    $region23: #{tpu_custom_call.1} parent=1 // pred_check_branch
      %51 = sbr.rel (0) target = $region25
    $region24: #{tpu_custom_call.1} parent=1 // pred_region
      %52 = dma.done [#allocation5], 16
    $region25: #{tpu_custom_call.1} parent=1 // pred_fallthru
      _
    %53 = sfence
    %v54 = vld [vmem:[#allocation6] ss:$4 sm:$0x3]
    %vm55 = vcmp.gt.f32.partialorder %v54, 0.5
    %v56 = vsel %vm55, 1, 0
    %v57 = vlaneseq
    %v58 = vshrl.u32 %v57, 7
    %v59 = vsub.s32 0, %v58
    %v60 = vrot.slane %v56, %v59
    %v61 = vlaneseq
    %v62 = vshrl.u32 %v61, 7
    %v63 = vsub.s32 1, %v62
    %v64 = vrot.slane %v56, %v63
    %vm65 = vcmp.eq.s32.totalorder %v60, 1
    %vm66 = vcmp.eq.s32.totalorder %v64, 1
    %s67 = scalar_lea.vmem [#allocation6], 1
    %v68 = vld [vmem:[%s67] ss:$4 sm:$0x3]
    %vm69 = vcmp.gt.f32.partialorder %v68, 0.5
    %v70 = vsel %vm69, 1, 0
    %v71 = vlaneseq
    %v72 = vshrl.u32 %v71, 7
    %v73 = vsub.s32 0, %v72
    %v74 = vrot.slane %v70, %v73
    %v75 = vlaneseq
    %v76 = vshrl.u32 %v75, 7
    %v77 = vsub.s32 1, %v76
    %v78 = vrot.slane %v70, %v77
    %vm79 = vcmp.eq.s32.totalorder %v74, 1
    %vm80 = vcmp.eq.s32.totalorder %v78, 1
    %s81 = scalar_lea.vmem [#allocation6], 2
    %v82 = vld [vmem:[%s81] ss:$4 sm:$0x3]
    %vm83 = vcmp.gt.f32.partialorder %v82, 0.5
    %v84 = vsel %vm83, 1, 0
    %v85 = vlaneseq
    %v86 = vshrl.u32 %v85, 7
    %v87 = vsub.s32 0, %v86
    %v88 = vrot.slane %v84, %v87
    %v89 = vlaneseq
    %v90 = vshrl.u32 %v89, 7
    %v91 = vsub.s32 1, %v90
    %v92 = vrot.slane %v84, %v91
    %vm93 = vcmp.eq.s32.totalorder %v88, 1
    %vm94 = vcmp.eq.s32.totalorder %v92, 1
    %s95 = scalar_lea.vmem [#allocation6], 3
    %v96 = vld [vmem:[%s95] ss:$4 sm:$0x3]
    %vm97 = vcmp.gt.f32.partialorder %v96, 0.5
    %v98 = vsel %vm97, 1, 0
    %v99 = vlaneseq
    %v100 = vshrl.u32 %v99, 7
    %v101 = vsub.s32 0, %v100
    %v102 = vrot.slane %v98, %v101
    %v103 = vlaneseq
    %v104 = vshrl.u32 %v103, 7
    %v105 = vsub.s32 1, %v104
    %v106 = vrot.slane %v98, %v105
    %vm107 = vcmp.eq.s32.totalorder %v102, 1
    %vm108 = vcmp.eq.s32.totalorder %v106, 1
    %v109 = vld [vmem:[#allocation2] ss:$4 sm:$0x3]
    %s110 = scalar_lea.vmem [#allocation2], 8
    %v111 = vld [vmem:[%s110] ss:$4 sm:$0x3]
    %v114 = vcombine.low %v109, %v111
    %v116 = vunpack.c.l.s4 1966171168
    %v117 = vunpack.c.0.s8 %v116
    %v118 = vlaneseq
    %v119 = vshrl.u32 %v118, 7
    %v120 = vsub.s32 %v117, %v119
    %v121 = vrot.slane %v114, %v120
    %v122 = vcombine.high %v121, %v121
    %v124 = vunpack.c.l.s4 1966171168
    %v125 = vunpack.c.0.s8 %v124
    %v126 = vlaneseq
    %v127 = vshrl.u32 %v126, 7
    %v128 = vsub.s32 %v125, %v127
    %v129 = vrot.slane %v121, %v128
    %v131 = vunpack.c.l.s4 1966171168
    %v132 = vunpack.c.0.s8 %v131
    %v133 = vlaneseq
    %v134 = vshrl.u32 %v133, 7
    %v135 = vsub.s32 %v132, %v134
    %v136 = vrot.slane %v122, %v135
    %139 = vrot.lane.b32.xlu0 %v129, 1
    %v140 = vpop.permute.xlu0 %139
    %141 = vrot.lane.b32.xlu0 %v136, 1
    %v142 = vpop.permute.xlu0 %141
    %v143 = vlaneseq
    %v144 = vand.u32 %v143, 127
    %vm145 = vcmp.lt.s32.totalorder %v144, 1
    %v146 = vsel %vm145, %v140, %v142
    %v147 = vsel %vm145, %v142, %v140
    %v148 = vsel %vm65, %v147, 0.0
    %v149 = vsel %vm66, %v146, 0.0
    %150 = vrot.lane.b32.xlu0 %v129, 127
    %v151 = vpop.permute.xlu0 %150
    %152 = vrot.lane.b32.xlu0 %v136, 127
    %v153 = vpop.permute.xlu0 %152
    %vm154 = vcmp.lt.s32.totalorder %v144, 127
    %v155 = vsel %vm154, %v151, %v153
    %v156 = vsel %vm154, %v153, %v151
    %v157 = vsel %vm79, %v155, 0.0
    %v158 = vsel %vm80, %v156, 0.0
    %s159 = sld [smem:[#allocation8]]
    %v160 = vstv %s159
    %v161 = vmul.f32 %v148, %v160
    %v162 = vmul.f32 %v149, %v160
    %v163 = vadd.f32 %v161, 0.0
    %v164 = vadd.f32 %v162, 0.0
    %s165 = sld [smem:[#allocation8 + $0x1]]
    %v166 = vstv %s165
    %v167 = vmul.f32 %v109, %v166
    %v168 = vmul.f32 %v111, %v166
    %v171 = vcombine.low %v167, %v168
    %v173 = vunpack.c.l.s4 1966171168
    %v174 = vunpack.c.0.s8 %v173
    %v175 = vlaneseq
    %v176 = vshrl.u32 %v175, 7
    %v177 = vsub.s32 %v174, %v176
    %v178 = vrot.slane %v171, %v177
    %v179 = vcombine.high %v178, %v178
    %v181 = vunpack.c.l.s4 1966171168
    %v182 = vunpack.c.0.s8 %v181
    %v183 = vlaneseq
    %v184 = vshrl.u32 %v183, 7
    %v185 = vsub.s32 %v182, %v184
    %v186 = vrot.slane %v178, %v185
    %v188 = vunpack.c.l.s4 1966171168
    %v189 = vunpack.c.0.s8 %v188
    %v190 = vlaneseq
    %v191 = vshrl.u32 %v190, 7
    %v192 = vsub.s32 %v189, %v191
    %v193 = vrot.slane %v179, %v192
    %v196 = vadd.f32 %v163, %v186
    %v197 = vadd.f32 %v164, %v193
    %s198 = sld [smem:[#allocation8 + $0x2]]
    %v199 = vstv %s198
    %v200 = vmul.f32 %v157, %v199
    %v201 = vmul.f32 %v158, %v199
    %v202 = vadd.f32 %v196, %v200
    %v203 = vadd.f32 %v197, %v201
    %s204 = sld [smem:[#allocation8 + $0x3]]
    %v205 = vstv %s204
    %v206 = vmul.f32 %v148, %v205
    %v207 = vmul.f32 %v149, %v205
    %v208 = vadd.f32 %v206, 0.0
    %v209 = vadd.f32 %v207, 0.0
    %s210 = sld [smem:[#allocation8 + $0x4]]
    %v211 = vstv %s210
    %v212 = vmul.f32 %v109, %v211
    %v213 = vmul.f32 %v111, %v211
    %v216 = vcombine.low %v212, %v213
    %v218 = vunpack.c.l.s4 1966171168
    %v219 = vunpack.c.0.s8 %v218
    %v220 = vlaneseq
    %v221 = vshrl.u32 %v220, 7
    %v222 = vsub.s32 %v219, %v221
    %v223 = vrot.slane %v216, %v222
    %v224 = vcombine.high %v223, %v223
    %v226 = vunpack.c.l.s4 1966171168
    %v227 = vunpack.c.0.s8 %v226
    %v228 = vlaneseq
    %v229 = vshrl.u32 %v228, 7
    %v230 = vsub.s32 %v227, %v229
    %v231 = vrot.slane %v223, %v230
    %v233 = vunpack.c.l.s4 1966171168
    %v234 = vunpack.c.0.s8 %v233
    %v235 = vlaneseq
    %v236 = vshrl.u32 %v235, 7
    %v237 = vsub.s32 %v234, %v236
    %v238 = vrot.slane %v224, %v237
    %v241 = vadd.f32 %v208, %v231
    %v242 = vadd.f32 %v209, %v238
    %s243 = sld [smem:[#allocation8 + $0x5]]
    %v244 = vstv %s243
    %v245 = vmul.f32 %v157, %v244
    %v246 = vmul.f32 %v158, %v244
    %v247 = vadd.f32 %v241, %v245
    %v248 = vadd.f32 %v242, %v246
    %s249 = sld [smem:[#allocation8 + $0x6]]
    %v250 = vstv %s249
    %v251 = vmul.f32 %v148, %v250
    %v252 = vmul.f32 %v149, %v250
    %v253 = vadd.f32 %v251, 0.0
    %v254 = vadd.f32 %v252, 0.0
    %s255 = sld [smem:[#allocation8 + $0x7]]
    %v256 = vstv %s255
    %v257 = vmul.f32 %v109, %v256
    %v258 = vmul.f32 %v111, %v256
    %v261 = vcombine.low %v257, %v258
    %v263 = vunpack.c.l.s4 1966171168
    %v264 = vunpack.c.0.s8 %v263
    %v265 = vlaneseq
    %v266 = vshrl.u32 %v265, 7
    %v267 = vsub.s32 %v264, %v266
    %v268 = vrot.slane %v261, %v267
    %v269 = vcombine.high %v268, %v268
    %v271 = vunpack.c.l.s4 1966171168
    %v272 = vunpack.c.0.s8 %v271
    %v273 = vlaneseq
    %v274 = vshrl.u32 %v273, 7
    %v275 = vsub.s32 %v272, %v274
    %v276 = vrot.slane %v268, %v275
    %v278 = vunpack.c.l.s4 1966171168
    %v279 = vunpack.c.0.s8 %v278
    %v280 = vlaneseq
    %v281 = vshrl.u32 %v280, 7
    %v282 = vsub.s32 %v279, %v281
    %v283 = vrot.slane %v269, %v282
    %v286 = vadd.f32 %v253, %v276
    %v287 = vadd.f32 %v254, %v283
    %s288 = sld [smem:[#allocation8 + $0x8]]
    %v289 = vstv %s288
    %v290 = vmul.f32 %v157, %v289
    %v291 = vmul.f32 %v158, %v289
    %v292 = vadd.f32 %v286, %v290
    %v293 = vadd.f32 %v287, %v291
    %s294 = scalar_lea.vmem [#allocation2], 1
    %v295 = vld [vmem:[%s294] ss:$4 sm:$0x3]
    %s296 = scalar_lea.vmem [#allocation2], 9
    %v297 = vld [vmem:[%s296] ss:$4 sm:$0x3]
    %v300 = vcombine.low %v295, %v297
    %v302 = vunpack.c.l.s4 1966171168
    %v303 = vunpack.c.0.s8 %v302
    %v304 = vlaneseq
    %v305 = vshrl.u32 %v304, 7
    %v306 = vsub.s32 %v303, %v305
    %v307 = vrot.slane %v300, %v306
    %v308 = vcombine.high %v307, %v307
    %v310 = vunpack.c.l.s4 1966171168
    %v311 = vunpack.c.0.s8 %v310
    %v312 = vlaneseq
    %v313 = vshrl.u32 %v312, 7
    %v314 = vsub.s32 %v311, %v313
    %v315 = vrot.slane %v307, %v314
    %v317 = vunpack.c.l.s4 1966171168
    %v318 = vunpack.c.0.s8 %v317
    %v319 = vlaneseq
    %v320 = vshrl.u32 %v319, 7
    %v321 = vsub.s32 %v318, %v320
    %v322 = vrot.slane %v308, %v321
    %325 = vrot.lane.b32.xlu0 %v315, 1
    %v326 = vpop.permute.xlu0 %325
    %327 = vrot.lane.b32.xlu0 %v322, 1
    %v328 = vpop.permute.xlu0 %327
    %v329 = vsel %vm145, %v326, %v328
    %v330 = vsel %vm145, %v328, %v326
    %v331 = vsel %vm65, %v330, 0.0
    %v332 = vsel %vm66, %v329, 0.0
    %333 = vrot.lane.b32.xlu0 %v315, 127
    %v334 = vpop.permute.xlu0 %333
    %335 = vrot.lane.b32.xlu0 %v322, 127
    %v336 = vpop.permute.xlu0 %335
    %v337 = vsel %vm154, %v334, %v336
    %v338 = vsel %vm154, %v336, %v334
    %v339 = vsel %vm79, %v337, 0.0
    %v340 = vsel %vm80, %v338, 0.0
    %s341 = sld [smem:[#allocation8 + $0x9]]
    %v342 = vstv %s341
    %v343 = vmul.f32 %v331, %v342
    %v344 = vmul.f32 %v332, %v342
    %v345 = vadd.f32 %v202, %v343
    %v346 = vadd.f32 %v203, %v344
    %s347 = sld [smem:[#allocation8 + $0xa]]
    %v348 = vstv %s347
    %v349 = vmul.f32 %v295, %v348
    %v350 = vmul.f32 %v297, %v348
    %v353 = vcombine.low %v349, %v350
    %v355 = vunpack.c.l.s4 1966171168
    %v356 = vunpack.c.0.s8 %v355
    %v357 = vlaneseq
    %v358 = vshrl.u32 %v357, 7
    %v359 = vsub.s32 %v356, %v358
    %v360 = vrot.slane %v353, %v359
    %v361 = vcombine.high %v360, %v360
    %v363 = vunpack.c.l.s4 1966171168
    %v364 = vunpack.c.0.s8 %v363
    %v365 = vlaneseq
    %v366 = vshrl.u32 %v365, 7
    %v367 = vsub.s32 %v364, %v366
    %v368 = vrot.slane %v360, %v367
    %v370 = vunpack.c.l.s4 1966171168
    %v371 = vunpack.c.0.s8 %v370
    %v372 = vlaneseq
    %v373 = vshrl.u32 %v372, 7
    %v374 = vsub.s32 %v371, %v373
    %v375 = vrot.slane %v361, %v374
    %v378 = vadd.f32 %v345, %v368
    %v379 = vadd.f32 %v346, %v375
    %s380 = sld [smem:[#allocation8 + $0xb]]
    %v381 = vstv %s380
    %v382 = vmul.f32 %v339, %v381
    %v383 = vmul.f32 %v340, %v381
    %v384 = vadd.f32 %v378, %v382
    %v385 = vadd.f32 %v379, %v383
    %s386 = sld [smem:[#allocation8 + $0xc]]
    %v387 = vstv %s386
    %v388 = vmul.f32 %v331, %v387
    %v389 = vmul.f32 %v332, %v387
    %v390 = vadd.f32 %v247, %v388
    %v391 = vadd.f32 %v248, %v389
    %s392 = sld [smem:[#allocation8 + $0xd]]
    %v393 = vstv %s392
    %v394 = vmul.f32 %v295, %v393
    %v395 = vmul.f32 %v297, %v393
    %v398 = vcombine.low %v394, %v395
    %v400 = vunpack.c.l.s4 1966171168
    %v401 = vunpack.c.0.s8 %v400
    %v402 = vlaneseq
    %v403 = vshrl.u32 %v402, 7
    %v404 = vsub.s32 %v401, %v403
    %v405 = vrot.slane %v398, %v404
    %v406 = vcombine.high %v405, %v405
    %v408 = vunpack.c.l.s4 1966171168
    %v409 = vunpack.c.0.s8 %v408
    %v410 = vlaneseq
    %v411 = vshrl.u32 %v410, 7
    %v412 = vsub.s32 %v409, %v411
    %v413 = vrot.slane %v405, %v412
    %v415 = vunpack.c.l.s4 1966171168
    %v416 = vunpack.c.0.s8 %v415
    %v417 = vlaneseq
    %v418 = vshrl.u32 %v417, 7
    %v419 = vsub.s32 %v416, %v418
    %v420 = vrot.slane %v406, %v419
    %v423 = vadd.f32 %v390, %v413
    %v424 = vadd.f32 %v391, %v420
    %s425 = sld [smem:[#allocation8 + $0xe]]
    %v426 = vstv %s425
    %v427 = vmul.f32 %v339, %v426
    %v428 = vmul.f32 %v340, %v426
    %v429 = vadd.f32 %v423, %v427
    %v430 = vadd.f32 %v424, %v428
    %s431 = sld [smem:[#allocation8 + $0xf]]
    %v432 = vstv %s431
    %v433 = vmul.f32 %v331, %v432
    %v434 = vmul.f32 %v332, %v432
    %v435 = vadd.f32 %v292, %v433
    %v436 = vadd.f32 %v293, %v434
    %s437 = sld [smem:[#allocation8 + $0x10]]
    %v438 = vstv %s437
    %v439 = vmul.f32 %v295, %v438
    %v440 = vmul.f32 %v297, %v438
    %v443 = vcombine.low %v439, %v440
    %v445 = vunpack.c.l.s4 1966171168
    %v446 = vunpack.c.0.s8 %v445
    %v447 = vlaneseq
    %v448 = vshrl.u32 %v447, 7
    %v449 = vsub.s32 %v446, %v448
    %v450 = vrot.slane %v443, %v449
    %v451 = vcombine.high %v450, %v450
    %v453 = vunpack.c.l.s4 1966171168
    %v454 = vunpack.c.0.s8 %v453
    %v455 = vlaneseq
    %v456 = vshrl.u32 %v455, 7
    %v457 = vsub.s32 %v454, %v456
    %v458 = vrot.slane %v450, %v457
    %v460 = vunpack.c.l.s4 1966171168
    %v461 = vunpack.c.0.s8 %v460
    %v462 = vlaneseq
    %v463 = vshrl.u32 %v462, 7
    %v464 = vsub.s32 %v461, %v463
    %v465 = vrot.slane %v451, %v464
    %v468 = vadd.f32 %v435, %v458
    %v469 = vadd.f32 %v436, %v465
    %s470 = sld [smem:[#allocation8 + $0x11]]
    %v471 = vstv %s470
    %v472 = vmul.f32 %v339, %v471
    %v473 = vmul.f32 %v340, %v471
    %v474 = vadd.f32 %v468, %v472
    %v475 = vadd.f32 %v469, %v473
    %s476 = scalar_lea.vmem [#allocation2], 2
    %v477 = vld [vmem:[%s476] ss:$4 sm:$0x3]
    %s478 = scalar_lea.vmem [#allocation2], 10
    %v479 = vld [vmem:[%s478] ss:$4 sm:$0x3]
    %v482 = vcombine.low %v477, %v479
    %v484 = vunpack.c.l.s4 1966171168
    %v485 = vunpack.c.0.s8 %v484
    %v486 = vlaneseq
    %v487 = vshrl.u32 %v486, 7
    %v488 = vsub.s32 %v485, %v487
    %v489 = vrot.slane %v482, %v488
    %v490 = vcombine.high %v489, %v489
    %v492 = vunpack.c.l.s4 1966171168
    %v493 = vunpack.c.0.s8 %v492
    %v494 = vlaneseq
    %v495 = vshrl.u32 %v494, 7
    %v496 = vsub.s32 %v493, %v495
    %v497 = vrot.slane %v489, %v496
    %v499 = vunpack.c.l.s4 1966171168
    %v500 = vunpack.c.0.s8 %v499
    %v501 = vlaneseq
    %v502 = vshrl.u32 %v501, 7
    %v503 = vsub.s32 %v500, %v502
    %v504 = vrot.slane %v490, %v503
    %507 = vrot.lane.b32.xlu0 %v497, 1
    %v508 = vpop.permute.xlu0 %507
    %509 = vrot.lane.b32.xlu0 %v504, 1
    %v510 = vpop.permute.xlu0 %509
    %v511 = vsel %vm145, %v508, %v510
    %v512 = vsel %vm145, %v510, %v508
    %v513 = vsel %vm65, %v512, 0.0
    %v514 = vsel %vm66, %v511, 0.0
    %515 = vrot.lane.b32.xlu0 %v497, 127
    %v516 = vpop.permute.xlu0 %515
    %517 = vrot.lane.b32.xlu0 %v504, 127
    %v518 = vpop.permute.xlu0 %517
    %v519 = vsel %vm154, %v516, %v518
    %v520 = vsel %vm154, %v518, %v516
    %v521 = vsel %vm79, %v519, 0.0
    %v522 = vsel %vm80, %v520, 0.0
    %s523 = sld [smem:[#allocation8 + $0x12]]
    %v524 = vstv %s523
    %v525 = vmul.f32 %v513, %v524
    %v526 = vmul.f32 %v514, %v524
    %v527 = vadd.f32 %v384, %v525
    %v528 = vadd.f32 %v385, %v526
    %s529 = sld [smem:[#allocation8 + $0x13]]
    %v530 = vstv %s529
    %v531 = vmul.f32 %v477, %v530
    %v532 = vmul.f32 %v479, %v530
    %v535 = vcombine.low %v531, %v532
    %v537 = vunpack.c.l.s4 1966171168
    %v538 = vunpack.c.0.s8 %v537
    %v539 = vlaneseq
    %v540 = vshrl.u32 %v539, 7
    %v541 = vsub.s32 %v538, %v540
    %v542 = vrot.slane %v535, %v541
    %v543 = vcombine.high %v542, %v542
    %v545 = vunpack.c.l.s4 1966171168
    %v546 = vunpack.c.0.s8 %v545
    %v547 = vlaneseq
    %v548 = vshrl.u32 %v547, 7
    %v549 = vsub.s32 %v546, %v548
    %v550 = vrot.slane %v542, %v549
    %v552 = vunpack.c.l.s4 1966171168
    %v553 = vunpack.c.0.s8 %v552
    %v554 = vlaneseq
    %v555 = vshrl.u32 %v554, 7
    %v556 = vsub.s32 %v553, %v555
    %v557 = vrot.slane %v543, %v556
    %v560 = vadd.f32 %v527, %v550
    %v561 = vadd.f32 %v528, %v557
    %s562 = sld [smem:[#allocation8 + $0x14]]
    %v563 = vstv %s562
    %v564 = vmul.f32 %v521, %v563
    %v565 = vmul.f32 %v522, %v563
    %v566 = vadd.f32 %v560, %v564
    %v567 = vadd.f32 %v561, %v565
    %s568 = sld [smem:[#allocation8 + $0x15]]
    %v569 = vstv %s568
    %v570 = vmul.f32 %v513, %v569
    %v571 = vmul.f32 %v514, %v569
    %v572 = vadd.f32 %v429, %v570
    %v573 = vadd.f32 %v430, %v571
    %s574 = sld [smem:[#allocation8 + $0x16]]
    %v575 = vstv %s574
    %v576 = vmul.f32 %v477, %v575
    %v577 = vmul.f32 %v479, %v575
    %v580 = vcombine.low %v576, %v577
    %v582 = vunpack.c.l.s4 1966171168
    %v583 = vunpack.c.0.s8 %v582
    %v584 = vlaneseq
    %v585 = vshrl.u32 %v584, 7
    %v586 = vsub.s32 %v583, %v585
    %v587 = vrot.slane %v580, %v586
    %v588 = vcombine.high %v587, %v587
    %v590 = vunpack.c.l.s4 1966171168
    %v591 = vunpack.c.0.s8 %v590
    %v592 = vlaneseq
    %v593 = vshrl.u32 %v592, 7
    %v594 = vsub.s32 %v591, %v593
    %v595 = vrot.slane %v587, %v594
    %v597 = vunpack.c.l.s4 1966171168
    %v598 = vunpack.c.0.s8 %v597
    %v599 = vlaneseq
    %v600 = vshrl.u32 %v599, 7
    %v601 = vsub.s32 %v598, %v600
    %v602 = vrot.slane %v588, %v601
    %v605 = vadd.f32 %v572, %v595
    %v606 = vadd.f32 %v573, %v602
    %s607 = sld [smem:[#allocation8 + $0x17]]
    %v608 = vstv %s607
    %v609 = vmul.f32 %v521, %v608
    %v610 = vmul.f32 %v522, %v608
    %v611 = vadd.f32 %v605, %v609
    %v612 = vadd.f32 %v606, %v610
    %s613 = sld [smem:[#allocation8 + $0x18]]
    %v614 = vstv %s613
    %v615 = vmul.f32 %v513, %v614
    %v616 = vmul.f32 %v514, %v614
    %v617 = vadd.f32 %v474, %v615
    %v618 = vadd.f32 %v475, %v616
    %s619 = sld [smem:[#allocation8 + $0x19]]
    %v620 = vstv %s619
    %v621 = vmul.f32 %v477, %v620
    %v622 = vmul.f32 %v479, %v620
    %v625 = vcombine.low %v621, %v622
    %v627 = vunpack.c.l.s4 1966171168
    %v628 = vunpack.c.0.s8 %v627
    %v629 = vlaneseq
    %v630 = vshrl.u32 %v629, 7
    %v631 = vsub.s32 %v628, %v630
    %v632 = vrot.slane %v625, %v631
    %v633 = vcombine.high %v632, %v632
    %v635 = vunpack.c.l.s4 1966171168
    %v636 = vunpack.c.0.s8 %v635
    %v637 = vlaneseq
    %v638 = vshrl.u32 %v637, 7
    %v639 = vsub.s32 %v636, %v638
    %v640 = vrot.slane %v632, %v639
    %v642 = vunpack.c.l.s4 1966171168
    %v643 = vunpack.c.0.s8 %v642
    %v644 = vlaneseq
    %v645 = vshrl.u32 %v644, 7
    %v646 = vsub.s32 %v643, %v645
    %v647 = vrot.slane %v633, %v646
    %v650 = vadd.f32 %v617, %v640
    %v651 = vadd.f32 %v618, %v647
    %s652 = sld [smem:[#allocation8 + $0x1a]]
    %v653 = vstv %s652
    %v654 = vmul.f32 %v521, %v653
    %v655 = vmul.f32 %v522, %v653
    %v656 = vadd.f32 %v650, %v654
    %v657 = vadd.f32 %v651, %v655
    %s658 = scalar_lea.vmem [#allocation2], 3
    %v659 = vld [vmem:[%s658] ss:$4 sm:$0x3]
    %s660 = scalar_lea.vmem [#allocation2], 11
    %v661 = vld [vmem:[%s660] ss:$4 sm:$0x3]
    %v664 = vcombine.low %v659, %v661
    %v666 = vunpack.c.l.s4 1966171168
    %v667 = vunpack.c.0.s8 %v666
    %v668 = vlaneseq
    %v669 = vshrl.u32 %v668, 7
    %v670 = vsub.s32 %v667, %v669
    %v671 = vrot.slane %v664, %v670
    %v672 = vcombine.high %v671, %v671
    %v674 = vunpack.c.l.s4 1966171168
    %v675 = vunpack.c.0.s8 %v674
    %v676 = vlaneseq
    %v677 = vshrl.u32 %v676, 7
    %v678 = vsub.s32 %v675, %v677
    %v679 = vrot.slane %v671, %v678
    %v681 = vunpack.c.l.s4 1966171168
    %v682 = vunpack.c.0.s8 %v681
    %v683 = vlaneseq
    %v684 = vshrl.u32 %v683, 7
    %v685 = vsub.s32 %v682, %v684
    %v686 = vrot.slane %v672, %v685
    %689 = vrot.lane.b32.xlu0 %v679, 1
    %v690 = vpop.permute.xlu0 %689
    %691 = vrot.lane.b32.xlu0 %v686, 1
    %v692 = vpop.permute.xlu0 %691
    %v693 = vsel %vm145, %v690, %v692
    %v694 = vsel %vm145, %v692, %v690
    %v695 = vsel %vm65, %v694, 0.0
    %v696 = vsel %vm66, %v693, 0.0
    %697 = vrot.lane.b32.xlu0 %v679, 127
    %v698 = vpop.permute.xlu0 %697
    %699 = vrot.lane.b32.xlu0 %v686, 127
    %v700 = vpop.permute.xlu0 %699
    %v701 = vsel %vm154, %v698, %v700
    %v702 = vsel %vm154, %v700, %v698
    %v703 = vsel %vm79, %v701, 0.0
    %v704 = vsel %vm80, %v702, 0.0
    %s705 = sld [smem:[#allocation8 + $0x1b]]
    %v706 = vstv %s705
    %v707 = vmul.f32 %v695, %v706
    %v708 = vmul.f32 %v696, %v706
    %v709 = vadd.f32 %v566, %v707
    %v710 = vadd.f32 %v567, %v708
    %s711 = sld [smem:[#allocation8 + $0x1c]]
    %v712 = vstv %s711
    %v713 = vmul.f32 %v659, %v712
    %v714 = vmul.f32 %v661, %v712
    %v717 = vcombine.low %v713, %v714
    %v719 = vunpack.c.l.s4 1966171168
    %v720 = vunpack.c.0.s8 %v719
    %v721 = vlaneseq
    %v722 = vshrl.u32 %v721, 7
    %v723 = vsub.s32 %v720, %v722
    %v724 = vrot.slane %v717, %v723
    %v725 = vcombine.high %v724, %v724
    %v727 = vunpack.c.l.s4 1966171168
    %v728 = vunpack.c.0.s8 %v727
    %v729 = vlaneseq
    %v730 = vshrl.u32 %v729, 7
    %v731 = vsub.s32 %v728, %v730
    %v732 = vrot.slane %v724, %v731
    %v734 = vunpack.c.l.s4 1966171168
    %v735 = vunpack.c.0.s8 %v734
    %v736 = vlaneseq
    %v737 = vshrl.u32 %v736, 7
    %v738 = vsub.s32 %v735, %v737
    %v739 = vrot.slane %v725, %v738
    %v742 = vadd.f32 %v709, %v732
    %v743 = vadd.f32 %v710, %v739
    %s744 = sld [smem:[#allocation8 + $0x1d]]
    %v745 = vstv %s744
    %v746 = vmul.f32 %v703, %v745
    %v747 = vmul.f32 %v704, %v745
    %v748 = vadd.f32 %v742, %v746
    %v749 = vadd.f32 %v743, %v747
    %s750 = sld [smem:[#allocation8 + $0x1e]]
    %v751 = vstv %s750
    %v752 = vmul.f32 %v695, %v751
    %v753 = vmul.f32 %v696, %v751
    %v754 = vadd.f32 %v611, %v752
    %v755 = vadd.f32 %v612, %v753
    %s756 = sld [smem:[#allocation8 + $0x1f]]
    %v757 = vstv %s756
    %v758 = vmul.f32 %v659, %v757
    %v759 = vmul.f32 %v661, %v757
    %v762 = vcombine.low %v758, %v759
    %v764 = vunpack.c.l.s4 1966171168
    %v765 = vunpack.c.0.s8 %v764
    %v766 = vlaneseq
    %v767 = vshrl.u32 %v766, 7
    %v768 = vsub.s32 %v765, %v767
    %v769 = vrot.slane %v762, %v768
    %v770 = vcombine.high %v769, %v769
    %v772 = vunpack.c.l.s4 1966171168
    %v773 = vunpack.c.0.s8 %v772
    %v774 = vlaneseq
    %v775 = vshrl.u32 %v774, 7
    %v776 = vsub.s32 %v773, %v775
    %v777 = vrot.slane %v769, %v776
    %v779 = vunpack.c.l.s4 1966171168
    %v780 = vunpack.c.0.s8 %v779
    %v781 = vlaneseq
    %v782 = vshrl.u32 %v781, 7
    %v783 = vsub.s32 %v780, %v782
    %v784 = vrot.slane %v770, %v783
    %v787 = vadd.f32 %v754, %v777
    %v788 = vadd.f32 %v755, %v784
    %s789 = sld [smem:[#allocation8 + $0x20]]
    %v790 = vstv %s789
    %v791 = vmul.f32 %v703, %v790
    %v792 = vmul.f32 %v704, %v790
    %v793 = vadd.f32 %v787, %v791
    %v794 = vadd.f32 %v788, %v792
    %s795 = sld [smem:[#allocation8 + $0x21]]
    %v796 = vstv %s795
    %v797 = vmul.f32 %v695, %v796
    %v798 = vmul.f32 %v696, %v796
    %v799 = vadd.f32 %v656, %v797
    %v800 = vadd.f32 %v657, %v798
    %s801 = sld [smem:[#allocation8 + $0x22]]
    %v802 = vstv %s801
    %v803 = vmul.f32 %v659, %v802
    %v804 = vmul.f32 %v661, %v802
    %v807 = vcombine.low %v803, %v804
    %v809 = vunpack.c.l.s4 1966171168
    %v810 = vunpack.c.0.s8 %v809
    %v811 = vlaneseq
    %v812 = vshrl.u32 %v811, 7
    %v813 = vsub.s32 %v810, %v812
    %v814 = vrot.slane %v807, %v813
    %v815 = vcombine.high %v814, %v814
    %v817 = vunpack.c.l.s4 1966171168
    %v818 = vunpack.c.0.s8 %v817
    %v819 = vlaneseq
    %v820 = vshrl.u32 %v819, 7
    %v821 = vsub.s32 %v818, %v820
    %v822 = vrot.slane %v814, %v821
    %v824 = vunpack.c.l.s4 1966171168
    %v825 = vunpack.c.0.s8 %v824
    %v826 = vlaneseq
    %v827 = vshrl.u32 %v826, 7
    %v828 = vsub.s32 %v825, %v827
    %v829 = vrot.slane %v815, %v828
    %v832 = vadd.f32 %v799, %v822
    %v833 = vadd.f32 %v800, %v829
    %s834 = sld [smem:[#allocation8 + $0x23]]
    %v835 = vstv %s834
    %v836 = vmul.f32 %v703, %v835
    %v837 = vmul.f32 %v704, %v835
    %v838 = vadd.f32 %v832, %v836
    %v839 = vadd.f32 %v833, %v837
    %s840 = sld [smem:[#allocation8 + $0x24]]
    %v841 = vstv %s840
    %v842 = vadd.f32 %v793, %v841
    %v843 = vadd.f32 %v794, %v841
    %844 = vrot.lane.b32.xlu0 %v748, 16
    %v845 = vpop.permute.xlu0 %844
    %846 = vrot.lane.b32.xlu0 %v749, 16
    %v847 = vpop.permute.xlu0 %846
    %vm848 = vcmp.lt.s32.totalorder %v144, 16
    %v849 = vsel %vm848, %v845, %v847
    %v850 = vsel %vm848, %v847, %v845
    %v851 = vsel %vm93, %v850, 0.0
    %v852 = vsel %vm94, %v849, 0.0
    %v853 = vadd.f32 %v842, %v851
    %v854 = vadd.f32 %v843, %v852
    %855 = vrot.lane.b32.xlu0 %v838, 112
    %v856 = vpop.permute.xlu0 %855
    %857 = vrot.lane.b32.xlu0 %v839, 112
    %v858 = vpop.permute.xlu0 %857
    %vm859 = vcmp.lt.s32.totalorder %v144, 112
    %v860 = vsel %vm859, %v856, %v858
    %v861 = vsel %vm859, %v858, %v856
    %v862 = vsel %vm107, %v860, 0.0
    %v863 = vsel %vm108, %v861, 0.0
    %v864 = vadd.f32 %v853, %v862
    %v865 = vadd.f32 %v854, %v863
    %v866 = vmul.f32 %v864, 1.442695
    %v867 = vpow.pop %v866
    %v868 = vmul.f32 %v865, 1.442695
    %v869 = vpow.pop %v868
    %v872 = vcombine.low %v867, %v869
    %v874 = vunpack.c.l.s4 1966171168
    %v875 = vunpack.c.0.s8 %v874
    %v876 = vlaneseq
    %v877 = vshrl.u32 %v876, 7
    %v878 = vsub.s32 %v875, %v877
    %v879 = vrot.slane %v872, %v878
    %v880 = vcombine.high %v879, %v879
    %v882 = vunpack.c.l.s4 1966171168
    %v883 = vunpack.c.0.s8 %v882
    %v884 = vlaneseq
    %v885 = vshrl.u32 %v884, 7
    %v886 = vsub.s32 %v883, %v885
    %v887 = vrot.slane %v879, %v886
    %v889 = vunpack.c.l.s4 1966171168
    %v890 = vunpack.c.0.s8 %v889
    %v891 = vlaneseq
    %v892 = vshrl.u32 %v891, 7
    %v893 = vsub.s32 %v890, %v892
    %v894 = vrot.slane %v880, %v893
    %v897 = vlaneseq
    %vm898 = vcmp.ge.s32.totalorder %v897, 0
    %vm899 = vcmp.lt.s32.totalorder %v897, 256
    %vm900 = vmand %vm898, %vm899
    %901 = vst.msk [vmem:[#allocation9] sm:$0x3] %vm900, %v887
    %902 = vst.msk [vmem:[#allocation9 + $0x2] sm:$0x3] %vm900, %v894
    // Predicated region
    $region26: #{tpu_custom_call.1} parent=1 // pred_check
      _
    $region27: #{tpu_custom_call.1} parent=1 // pred_check_branch
      %904 = sbr.rel (0) target = $region29
    $region28: #{tpu_custom_call.1} parent=1 // pred_region
      %s906 = ssub.s32 64, 64
      %907 = vsyncadd [#allocation4], %s906
      %s908 = sshll.u32 [#allocation9], 4
      %s909 = int_to_ptr.vmem [resolvable:$true] %s908
      %914 = dma.vmem_to_hbm [thread:$0]  %s909, 64, %s3, [#allocation4], 32, 32, 2
    $region29: #{tpu_custom_call.1} parent=1 // pred_fallthru
      _
    // Predicated region
    $region30: #{tpu_custom_call.1} parent=1 // pred_check
      _
    $region31: #{tpu_custom_call.1} parent=1 // pred_check_branch
      %916 = sbr.rel (0) target = $region33
    $region32: #{tpu_custom_call.1} parent=1 // pred_region
      %917 = dma.done [#allocation4], 64
    $region33: #{tpu_custom_call.1} parent=1 // pred_fallthru
      _
    %918 = vsyncpa [#allocation3], 1
    %919 = vsyncpa [#allocation7], 1
    %920 = vsyncpa [#allocation4], 1
    %921 = vsyncpa [#allocation5], 1

</llo_original>
